<compile_context>
chip_gen: v5e
topology: v5e:2x2
jax: 0.10.0
libtpu: 0.0.40
codegen_flags: <defaults>
</compile_context>

<pallas_src>
import functools

import jax
import jax.numpy as jnp
from jax.experimental import pallas as pl
from jax.experimental.pallas import tpu as pltpu


_TARGET_BLOCK_BYTES = 2 * 1024 * 1024   # ~2 MiB block (double-buffered in+out
                                        # = ~8 MiB, safe on all chips' defaults)
_MIN_BLOCK_BYTES = 1 * 1024 * 1024      # don't shrink blocks below ~1 MiB
_MIN_GRID_STEPS = 8                     # >= 4 steps per TensorCore on v7x


def _intensify_kernel(x_ref, o_ref, *, method):
    # bf16 inputs: keep transcendental math in bf16 (v6e/v7x have bf16 EUP/VPU;
    # halves HBM bytes without going EUP-bound).  Everything else runs in f32.
    # On v5e (no bf16 EUP/VALU) Mosaic legalizes bf16 math by widening.
    cdtype = jnp.bfloat16 if x_ref.dtype == jnp.bfloat16 else jnp.float32
    x = x_ref[...].astype(cdtype)
    if method == "arcsinh":
        # Two EUP pushes (sqrt + log); sign handled with one compare+select.
        ax = jnp.abs(x)
        t = jnp.log(ax + jnp.sqrt(ax * ax + 1.0))
        y = jnp.where(x < 0, -t, t)
    elif method == "sinh":
        # Two exps on the (otherwise idle) EUP slot; no exact divide.
        y = 0.5 * (jnp.exp(x) - jnp.exp(-x))
    else:
        raise ValueError("Unsupported intensification method.")
    o_ref[...] = y.astype(o_ref.dtype)


def _choose_batch_tile(batch, slice_bytes):
    """Tile size along the collapsed-leading ('batch') axis."""
    if batch <= 1:
        return 1
    tb = min(max(1, _TARGET_BLOCK_BYTES // slice_bytes), batch)   # ~2 MiB cap
    # Prefer >= _MIN_GRID_STEPS grid steps (steady-state double buffering,
    # both v7x cores busy) but never shrink blocks below ~1 MiB.
    tb_floor = max(1, _MIN_BLOCK_BYTES // slice_bytes)
    tb_for_steps = max(1, batch // _MIN_GRID_STEPS)
    tb = min(tb, max(tb_floor, tb_for_steps))
    return max(1, tb)


def _choose_h_tile(h, row_bytes):
    """Tile along the second-to-last dim when one (H, W) slice exceeds target."""
    th = max(8, (_TARGET_BLOCK_BYTES // max(row_bytes, 1)) // 8 * 8)
    return h if th >= h else th


def intensifier(x, intensification_method="arcsinh", donate=False):
    """Forward pass of `Intensifier` on an NCHW (or any-shape) array."""
    if intensification_method not in ("identity", "arcsinh", "sinh"):
        raise ValueError("Unsupported intensification method.")

    # Identity is a no-op: never pay an HBM read + write for it.
    if intensification_method == "identity":
        return x

    orig_shape = x.shape
    itemsize = jnp.dtype(x.dtype).itemsize

    # Collapse only the leading dims -> (batch, H, W).  The minor-two dims are
    # unchanged, so under TPU tiled layouts this reshape is a bitcast (no
    # relayout copy), unlike a full flatten.
    if x.ndim >= 3:
        h, w = orig_shape[-2], orig_shape[-1]
        x3d = x.reshape(-1, h, w)
    elif x.ndim == 2:
        h, w = orig_shape
        x3d = x.reshape(1, h, w)
    else:  # 0-D / 1-D
        w = int(x.size) if x.ndim == 1 else 1
        h = 1
        x3d = x.reshape(1, 1, max(w, 1))
        w = max(w, 1)

    batch = x3d.shape[0]
    slice_bytes = h * w * itemsize

    if slice_bytes <= _TARGET_BLOCK_BYTES:
        # Grid over the collapsed leading axis only; trailing dims full-extent
        # so the (8,128) block constraint is always satisfied (block == dim).
        tb = _choose_batch_tile(batch, max(slice_bytes, 1))
        grid = (pl.cdiv(batch, tb),)
        block = (tb, h, w)
        index_map = lambda b: (b, 0, 0)
        dims = ("parallel",)
    else:
        # Large per-slice tensors: also tile H in multiples of 8 (full W).
        # TODO(synk): if a single row (W * itemsize) ever exceeds VMEM, the
        # last dim would need tiling in multiples of 128 as well.
        th = _choose_h_tile(h, w * itemsize)
        grid = (batch, pl.cdiv(h, th))
        block = (1, th, w)
        index_map = lambda b, i: (b, i, 0)
        dims = ("parallel", "parallel")

    kernel = functools.partial(_intensify_kernel, method=intensification_method)

    out3d = pl.pallas_call(
        kernel,
        out_shape=jax.ShapeDtypeStruct(x3d.shape, x.dtype),
        grid_spec=pltpu.PrefetchScalarGridSpec(
            num_scalar_prefetch=0,
            grid=grid,
            in_specs=[pl.BlockSpec(block, index_map)],
            out_specs=pl.BlockSpec(block, index_map),
        ),
        compiler_params=pltpu.CompilerParams(dimension_semantics=dims),
        input_output_aliases={0: 0} if donate else {},
    )(x3d)

    return out3d.reshape(orig_shape)


if __name__ == "__main__":
    key = jax.random.PRNGKey(0)
    k1, k2 = jax.random.split(key)

    # Small NCHW inputs consistent with the module.  The second shape has
    # H = W = 50 (not multiples of 8/128) to exercise the full-extent
    # trailing-dim path with no padding; the first exercises batch tiling.
    inputs = [
        jax.random.normal(k1, (2, 4, 16, 16), dtype=jnp.float32),
        jax.random.normal(k2, (2, 3, 50, 50), dtype=jnp.float32),
    ]

    refs = {
        "identity": lambda v: v,
        "arcsinh": jnp.arcsinh,
        "sinh": jnp.sinh,
    }

    ok = True
    for x in inputs:
        for method, ref_fn in refs.items():
            out = jax.block_until_ready(intensifier(x, method))
            ref = ref_fn(x)
            if out.shape != x.shape or not jnp.allclose(out, ref, atol=1e-5, rtol=1e-5):
                ok = False
                print(f"MISMATCH method={method} shape={x.shape}")

    if ok:
        print("KERNEL_OK")
</pallas_src>

<mosaic_0001>
module attributes {stable_mosaic.version = 11 : i64} {
  func.func @_intensify_kernel(%arg0: i32, %arg1: memref<8x16x16xf32, #tpu.memory_space<vmem>>, %arg2: memref<8x16x16xf32, #tpu.memory_space<vmem>>) attributes {dimension_semantics = [#tpu.dimension_semantics<parallel>], iteration_bounds = array<i64: 1>, scalar_prefetch = 0 : i64, scratch_operands = 0 : i64, tpu.core_type = #tpu.core_type<tc>, window_params = [{transform_indices = @transform_0, window_bounds = array<i64: 8, 16, 16>}, {transform_indices = @transform_1, window_bounds = array<i64: 8, 16, 16>}]} {
    %c0 = arith.constant 0 : index
    %c0_0 = arith.constant 0 : index
    %c0_1 = arith.constant 0 : index
    %0 = vector.load %arg1[%c0, %c0_0, %c0_1] : memref<8x16x16xf32, #tpu.memory_space<vmem>>, vector<8x16x16xf32>
    %1 = math.absf %0 : vector<8x16x16xf32>
    %2 = arith.mulf %1, %1 : vector<8x16x16xf32>
    %cst = arith.constant 1.000000e+00 : f32
    %3 = vector.broadcast %cst : f32 to vector<8x16x16xf32>
    %4 = arith.addf %2, %3 : vector<8x16x16xf32>
    %5 = math.sqrt %4 : vector<8x16x16xf32>
    %6 = arith.addf %1, %5 : vector<8x16x16xf32>
    %7 = math.log %6 : vector<8x16x16xf32>
    %cst_2 = arith.constant 0.000000e+00 : f32
    %8 = vector.broadcast %cst_2 : f32 to vector<8x16x16xf32>
    %9 = arith.cmpf olt, %0, %8 : vector<8x16x16xf32>
    %cst_3 = arith.constant 0.000000e+00 : f32
    %10 = vector.broadcast %cst_3 : f32 to vector<8x16x16xf32>
    %11 = arith.subf %10, %7 : vector<8x16x16xf32>
    %12 = arith.select %9, %11, %7 : vector<8x16x16xi1>, vector<8x16x16xf32>
    %c0_4 = arith.constant 0 : index
    %c0_5 = arith.constant 0 : index
    %c0_6 = arith.constant 0 : index
    %13 = vector.load %arg2[%c0_4, %c0_5, %c0_6] : memref<8x16x16xf32, #tpu.memory_space<vmem>>, vector<8x16x16xf32>
    tpu.vector_store %arg2[%c0_4, %c0_5, %c0_6], %12 {strides = array<i32>} : memref<8x16x16xf32, #tpu.memory_space<vmem>>, vector<8x16x16xf32>,
    return
  }
  func.func @transform_0(%arg0: i32) -> (i32, i32, i32) {
    %c0_i32 = arith.constant 0 : i32
    %c0_i32_0 = arith.constant 0 : i32
    %c0_i32_1 = arith.constant 0 : i32
    return %arg0, %c0_i32, %c0_i32_0 : i32, i32, i32
  }
  func.func @transform_1(%arg0: i32) -> (i32, i32, i32) {
    %c0_i32 = arith.constant 0 : i32
    %c0_i32_0 = arith.constant 0 : i32
    %c0_i32_1 = arith.constant 0 : i32
    return %arg0, %c0_i32, %c0_i32_0 : i32, i32, i32
  }
}

</mosaic_0001>

<llo_original>
// kernel: tpu_custom_call.1
$region0: #{tpu_custom_call.1}
  #allocation0 [shape = 'u32[]', space=smem, size = 0x4, offset = 0x4, fixed_abs, tag = 'smem constant byte address 0x4 - core index']
  #allocation1 [shape = 'u32[72,128]{1,0:T(1,128)}', space=vmem, size = 0x9000, scoped, tag = 'internal scratch']
  %s0 = inlined_call_operand.hbm [shape: f32[8,16,16], index: 0, kind: input, shape index: {}]
  %s1 = inlined_call_operand.hbm [shape: f32[8,16,16], index: 1, kind: output, shape index: {}]
  %s2 = sld [smem:[#allocation0]]
  $region18: #{tpu_custom_call.1} parent=0
    _
  %s4 = ssub.s32 1, %s2
  %s5 = scalar_select 0, %s4, %s2
  $region1: #{tpu_custom_call.1} parent=0
    #allocation2 [shape = 'u8[65536]{0}', space=vmem, size = 0x10000, scoped, tag = 'input window, operand 0, single buffered']
    #allocation3 [shape = 's32[1]{0}', space=sflag, size = 0x4, scoped, tag = 'scoped memory for tpu_custom_call.1']
    #allocation4 [shape = 's32[1]{0}', space=sflag, size = 0x4, scoped, tag = 'scoped memory for tpu_custom_call.1']
    #allocation5 [shape = 'u8[65536]{0}', space=vmem, size = 0x10000, scoped, tag = 'output window, operand 0, single buffered']
    %6 = vsyncpa [#allocation3], 0
    %7 = vsyncpa [#allocation4], 0
    // Predicated region
    $region2: #{tpu_custom_call.1} parent=1 // pred_check
      _
    $region3: #{tpu_custom_call.1} parent=1 // pred_check_branch
      %9 = sbr.rel (0) target = $region5
    $region4: #{tpu_custom_call.1} parent=1 // pred_region
      %11 = vsyncadd [#allocation3], 0
      %s12 = sshll.u32 %s0, 4
      %s13 = int_to_ptr.hbm [resolvable:$true] %s12
      %s14 = sshll.u32 [#allocation2], 4
      %s15 = int_to_ptr.vmem [resolvable:$true] %s14
      %20 = dma.hbm_to_vmem [thread:$0]  %s13, 2048, %s15, [#allocation3], 128, 128, 8
    $region5: #{tpu_custom_call.1} parent=1 // pred_fallthru
      _
    // Predicated region
    $region6: #{tpu_custom_call.1} parent=1 // pred_check
      _
    $region7: #{tpu_custom_call.1} parent=1 // pred_check_branch
      %22 = sbr.rel (0) target = $region9
    $region8: #{tpu_custom_call.1} parent=1 // pred_region
      %24 = dma.done [#allocation3], 2048
    $region9: #{tpu_custom_call.1} parent=1 // pred_fallthru
      _
    %v25 = vld [vmem:[#allocation2] sm:$0xff]
    %v26 = vld [vmem:[#allocation2 + $0x8] sm:$0xff]
    %v27 = vld [vmem:[#allocation2 + $0x10] sm:$0xff]
    %v28 = vld [vmem:[#allocation2 + $0x18] sm:$0xff]
    %v29 = vld [vmem:[#allocation2 + $0x20] sm:$0xff]
    %v30 = vld [vmem:[#allocation2 + $0x28] sm:$0xff]
    %v31 = vld [vmem:[#allocation2 + $0x30] sm:$0xff]
    %v32 = vld [vmem:[#allocation2 + $0x38] sm:$0xff]
    %v33 = vld [vmem:[#allocation2 + $0x40] sm:$0xff]
    %v34 = vld [vmem:[#allocation2 + $0x48] sm:$0xff]
    %v35 = vld [vmem:[#allocation2 + $0x50] sm:$0xff]
    %v36 = vld [vmem:[#allocation2 + $0x58] sm:$0xff]
    %v37 = vld [vmem:[#allocation2 + $0x60] sm:$0xff]
    %v38 = vld [vmem:[#allocation2 + $0x68] sm:$0xff]
    %v39 = vld [vmem:[#allocation2 + $0x70] sm:$0xff]
    %v40 = vld [vmem:[#allocation2 + $0x78] sm:$0xff]
    %v41 = vand.u32 2147483647, %v25
    %v42 = vand.u32 2147483647, %v26
    %v43 = vand.u32 2147483647, %v27
    %v44 = vand.u32 2147483647, %v28
    %v45 = vand.u32 2147483647, %v29
    %v46 = vand.u32 2147483647, %v30
    %v47 = vand.u32 2147483647, %v31
    %v48 = vand.u32 2147483647, %v32
    %v49 = vand.u32 2147483647, %v33
    %v50 = vand.u32 2147483647, %v34
    %v51 = vand.u32 2147483647, %v35
    %v52 = vand.u32 2147483647, %v36
    %v53 = vand.u32 2147483647, %v37
    %v54 = vand.u32 2147483647, %v38
    %v55 = vand.u32 2147483647, %v39
    %v56 = vand.u32 2147483647, %v40
    %v57 = vmul.f32 %v41, %v41
    %v58 = vmul.f32 %v42, %v42
    %v59 = vmul.f32 %v43, %v43
    %v60 = vmul.f32 %v44, %v44
    %v61 = vmul.f32 %v45, %v45
    %v62 = vmul.f32 %v46, %v46
    %v63 = vmul.f32 %v47, %v47
    %v64 = vmul.f32 %v48, %v48
    %v65 = vmul.f32 %v49, %v49
    %v66 = vmul.f32 %v50, %v50
    %v67 = vmul.f32 %v51, %v51
    %v68 = vmul.f32 %v52, %v52
    %v69 = vmul.f32 %v53, %v53
    %v70 = vmul.f32 %v54, %v54
    %v71 = vmul.f32 %v55, %v55
    %v72 = vmul.f32 %v56, %v56
    %v73 = vadd.f32 %v57, 1.0
    %v74 = vadd.f32 %v58, 1.0
    %v75 = vadd.f32 %v59, 1.0
    %v76 = vadd.f32 %v60, 1.0
    %v77 = vadd.f32 %v61, 1.0
    %v78 = vadd.f32 %v62, 1.0
    %v79 = vadd.f32 %v63, 1.0
    %v80 = vadd.f32 %v64, 1.0
    %v81 = vadd.f32 %v65, 1.0
    %v82 = vadd.f32 %v66, 1.0
    %v83 = vadd.f32 %v67, 1.0
    %v84 = vadd.f32 %v68, 1.0
    %v85 = vadd.f32 %v69, 1.0
    %v86 = vadd.f32 %v70, 1.0
    %v87 = vadd.f32 %v71, 1.0
    %v88 = vadd.f32 %v72, 1.0
    %v89 = vrsqrt.pop %v73
    %v90 = vmul.f32 %v89, %v73
    %v91 = vmul.f32 %v90, %v89
    %v92 = vmul.f32 0.5, %v91
    %v93 = vsub.f32 1.5, %v92
    %v94 = vmul.f32 %v89, %v93
    %v95 = vmul.f32 %v73, %v94
    %vm96 = vcmp.eq.f32.partialorder %v73, inf
    %v97 = vsel %vm96, %v73, %v95
    %vm98 = vcmp.eq.f32.partialorder %v73, 0.0
    %v99 = vand.u32 %v73, 2147483648
    %v100 = vsel %vm98, %v99, %v97
    %v101 = vrsqrt.pop %v74
    %v102 = vmul.f32 %v101, %v74
    %v103 = vmul.f32 %v102, %v101
    %v104 = vmul.f32 0.5, %v103
    %v105 = vsub.f32 1.5, %v104
    %v106 = vmul.f32 %v101, %v105
    %v107 = vmul.f32 %v74, %v106
    %vm108 = vcmp.eq.f32.partialorder %v74, inf
    %v109 = vsel %vm108, %v74, %v107
    %vm110 = vcmp.eq.f32.partialorder %v74, 0.0
    %v111 = vand.u32 %v74, 2147483648
    %v112 = vsel %vm110, %v111, %v109
    %v113 = vrsqrt.pop %v75
    %v114 = vmul.f32 %v113, %v75
    %v115 = vmul.f32 %v114, %v113
    %v116 = vmul.f32 0.5, %v115
    %v117 = vsub.f32 1.5, %v116
    %v118 = vmul.f32 %v113, %v117
    %v119 = vmul.f32 %v75, %v118
    %vm120 = vcmp.eq.f32.partialorder %v75, inf
    %v121 = vsel %vm120, %v75, %v119
    %vm122 = vcmp.eq.f32.partialorder %v75, 0.0
    %v123 = vand.u32 %v75, 2147483648
    %v124 = vsel %vm122, %v123, %v121
    %v125 = vrsqrt.pop %v76
    %v126 = vmul.f32 %v125, %v76
    %v127 = vmul.f32 %v126, %v125
    %v128 = vmul.f32 0.5, %v127
    %v129 = vsub.f32 1.5, %v128
    %v130 = vmul.f32 %v125, %v129
    %v131 = vmul.f32 %v76, %v130
    %vm132 = vcmp.eq.f32.partialorder %v76, inf
    %v133 = vsel %vm132, %v76, %v131
    %vm134 = vcmp.eq.f32.partialorder %v76, 0.0
    %v135 = vand.u32 %v76, 2147483648
    %v136 = vsel %vm134, %v135, %v133
    %v137 = vrsqrt.pop %v77
    %v138 = vmul.f32 %v137, %v77
    %v139 = vmul.f32 %v138, %v137
    %v140 = vmul.f32 0.5, %v139
    %v141 = vsub.f32 1.5, %v140
    %v142 = vmul.f32 %v137, %v141
    %v143 = vmul.f32 %v77, %v142
    %vm144 = vcmp.eq.f32.partialorder %v77, inf
    %v145 = vsel %vm144, %v77, %v143
    %vm146 = vcmp.eq.f32.partialorder %v77, 0.0
    %v147 = vand.u32 %v77, 2147483648
    %v148 = vsel %vm146, %v147, %v145
    %v149 = vrsqrt.pop %v78
    %v150 = vmul.f32 %v149, %v78
    %v151 = vmul.f32 %v150, %v149
    %v152 = vmul.f32 0.5, %v151
    %v153 = vsub.f32 1.5, %v152
    %v154 = vmul.f32 %v149, %v153
    %v155 = vmul.f32 %v78, %v154
    %vm156 = vcmp.eq.f32.partialorder %v78, inf
    %v157 = vsel %vm156, %v78, %v155
    %vm158 = vcmp.eq.f32.partialorder %v78, 0.0
    %v159 = vand.u32 %v78, 2147483648
    %v160 = vsel %vm158, %v159, %v157
    %v161 = vrsqrt.pop %v79
    %v162 = vmul.f32 %v161, %v79
    %v163 = vmul.f32 %v162, %v161
    %v164 = vmul.f32 0.5, %v163
    %v165 = vsub.f32 1.5, %v164
    %v166 = vmul.f32 %v161, %v165
    %v167 = vmul.f32 %v79, %v166
    %vm168 = vcmp.eq.f32.partialorder %v79, inf
    %v169 = vsel %vm168, %v79, %v167
    %vm170 = vcmp.eq.f32.partialorder %v79, 0.0
    %v171 = vand.u32 %v79, 2147483648
    %v172 = vsel %vm170, %v171, %v169
    %v173 = vrsqrt.pop %v80
    %v174 = vmul.f32 %v173, %v80
    %v175 = vmul.f32 %v174, %v173
    %v176 = vmul.f32 0.5, %v175
    %v177 = vsub.f32 1.5, %v176
    %v178 = vmul.f32 %v173, %v177
    %v179 = vmul.f32 %v80, %v178
    %vm180 = vcmp.eq.f32.partialorder %v80, inf
    %v181 = vsel %vm180, %v80, %v179
    %vm182 = vcmp.eq.f32.partialorder %v80, 0.0
    %v183 = vand.u32 %v80, 2147483648
    %v184 = vsel %vm182, %v183, %v181
    %v185 = vrsqrt.pop %v81
    %v186 = vmul.f32 %v185, %v81
    %v187 = vmul.f32 %v186, %v185
    %v188 = vmul.f32 0.5, %v187
    %v189 = vsub.f32 1.5, %v188
    %v190 = vmul.f32 %v185, %v189
    %v191 = vmul.f32 %v81, %v190
    %vm192 = vcmp.eq.f32.partialorder %v81, inf
    %v193 = vsel %vm192, %v81, %v191
    %vm194 = vcmp.eq.f32.partialorder %v81, 0.0
    %v195 = vand.u32 %v81, 2147483648
    %v196 = vsel %vm194, %v195, %v193
    %v197 = vrsqrt.pop %v82
    %v198 = vmul.f32 %v197, %v82
    %v199 = vmul.f32 %v198, %v197
    %v200 = vmul.f32 0.5, %v199
    %v201 = vsub.f32 1.5, %v200
    %v202 = vmul.f32 %v197, %v201
    %v203 = vmul.f32 %v82, %v202
    %vm204 = vcmp.eq.f32.partialorder %v82, inf
    %v205 = vsel %vm204, %v82, %v203
    %vm206 = vcmp.eq.f32.partialorder %v82, 0.0
    %v207 = vand.u32 %v82, 2147483648
    %v208 = vsel %vm206, %v207, %v205
    %v209 = vrsqrt.pop %v83
    %v210 = vmul.f32 %v209, %v83
    %v211 = vmul.f32 %v210, %v209
    %v212 = vmul.f32 0.5, %v211
    %v213 = vsub.f32 1.5, %v212
    %v214 = vmul.f32 %v209, %v213
    %v215 = vmul.f32 %v83, %v214
    %vm216 = vcmp.eq.f32.partialorder %v83, inf
    %v217 = vsel %vm216, %v83, %v215
    %vm218 = vcmp.eq.f32.partialorder %v83, 0.0
    %v219 = vand.u32 %v83, 2147483648
    %v220 = vsel %vm218, %v219, %v217
    %v221 = vrsqrt.pop %v84
    %v222 = vmul.f32 %v221, %v84
    %v223 = vmul.f32 %v222, %v221
    %v224 = vmul.f32 0.5, %v223
    %v225 = vsub.f32 1.5, %v224
    %v226 = vmul.f32 %v221, %v225
    %v227 = vmul.f32 %v84, %v226
    %vm228 = vcmp.eq.f32.partialorder %v84, inf
    %v229 = vsel %vm228, %v84, %v227
    %vm230 = vcmp.eq.f32.partialorder %v84, 0.0
    %v231 = vand.u32 %v84, 2147483648
    %v232 = vsel %vm230, %v231, %v229
    %v233 = vrsqrt.pop %v85
    %v234 = vmul.f32 %v233, %v85
    %v235 = vmul.f32 %v234, %v233
    %v236 = vmul.f32 0.5, %v235
    %v237 = vsub.f32 1.5, %v236
    %v238 = vmul.f32 %v233, %v237
    %v239 = vmul.f32 %v85, %v238
    %vm240 = vcmp.eq.f32.partialorder %v85, inf
    %v241 = vsel %vm240, %v85, %v239
    %vm242 = vcmp.eq.f32.partialorder %v85, 0.0
    %v243 = vand.u32 %v85, 2147483648
    %v244 = vsel %vm242, %v243, %v241
    %v245 = vrsqrt.pop %v86
    %v246 = vmul.f32 %v245, %v86
    %v247 = vmul.f32 %v246, %v245
    %v248 = vmul.f32 0.5, %v247
    %v249 = vsub.f32 1.5, %v248
    %v250 = vmul.f32 %v245, %v249
    %v251 = vmul.f32 %v86, %v250
    %vm252 = vcmp.eq.f32.partialorder %v86, inf
    %v253 = vsel %vm252, %v86, %v251
    %vm254 = vcmp.eq.f32.partialorder %v86, 0.0
    %v255 = vand.u32 %v86, 2147483648
    %v256 = vsel %vm254, %v255, %v253
    %v257 = vrsqrt.pop %v87
    %v258 = vmul.f32 %v257, %v87
    %v259 = vmul.f32 %v258, %v257
    %v260 = vmul.f32 0.5, %v259
    %v261 = vsub.f32 1.5, %v260
    %v262 = vmul.f32 %v257, %v261
    %v263 = vmul.f32 %v87, %v262
    %vm264 = vcmp.eq.f32.partialorder %v87, inf
    %v265 = vsel %vm264, %v87, %v263
    %vm266 = vcmp.eq.f32.partialorder %v87, 0.0
    %v267 = vand.u32 %v87, 2147483648
    %v268 = vsel %vm266, %v267, %v265
    %v269 = vrsqrt.pop %v88
    %v270 = vmul.f32 %v269, %v88
    %v271 = vmul.f32 %v270, %v269
    %v272 = vmul.f32 0.5, %v271
    %v273 = vsub.f32 1.5, %v272
    %v274 = vmul.f32 %v269, %v273
    %v275 = vmul.f32 %v88, %v274
    %vm276 = vcmp.eq.f32.partialorder %v88, inf
    %v277 = vsel %vm276, %v88, %v275
    %vm278 = vcmp.eq.f32.partialorder %v88, 0.0
    %v279 = vand.u32 %v88, 2147483648
    %v280 = vsel %vm278, %v279, %v277
    %v281 = vadd.f32 %v41, %v100
    %v282 = vadd.f32 %v42, %v112
    %v283 = vadd.f32 %v43, %v124
    %v284 = vadd.f32 %v44, %v136
    %v285 = vadd.f32 %v45, %v148
    %v286 = vadd.f32 %v46, %v160
    %v287 = vadd.f32 %v47, %v172
    %v288 = vadd.f32 %v48, %v184
    %v289 = vadd.f32 %v49, %v196
    %v290 = vadd.f32 %v50, %v208
    %v291 = vadd.f32 %v51, %v220
    %v292 = vadd.f32 %v52, %v232
    %v293 = vadd.f32 %v53, %v244
    %v294 = vadd.f32 %v54, %v256
    %v295 = vadd.f32 %v55, %v268
    %v296 = vadd.f32 %v56, %v280
    %v297 = vlog2.pop %v281
    %v298 = vmul.f32 %v297, 0.6931472
    %v299 = vlog2.pop %v282
    %v300 = vmul.f32 %v299, 0.6931472
    %v301 = vlog2.pop %v283
    %v302 = vmul.f32 %v301, 0.6931472
    %v303 = vlog2.pop %v284
    %v304 = vmul.f32 %v303, 0.6931472
    %v305 = vlog2.pop %v285
    %v306 = vmul.f32 %v305, 0.6931472
    %v307 = vlog2.pop %v286
    %v308 = vmul.f32 %v307, 0.6931472
    %v309 = vlog2.pop %v287
    %v310 = vmul.f32 %v309, 0.6931472
    %v311 = vlog2.pop %v288
    %v312 = vmul.f32 %v311, 0.6931472
    %v313 = vlog2.pop %v289
    %v314 = vmul.f32 %v313, 0.6931472
    %v315 = vlog2.pop %v290
    %v316 = vmul.f32 %v315, 0.6931472
    %v317 = vlog2.pop %v291
    %v318 = vmul.f32 %v317, 0.6931472
    %v319 = vlog2.pop %v292
    %v320 = vmul.f32 %v319, 0.6931472
    %v321 = vlog2.pop %v293
    %v322 = vmul.f32 %v321, 0.6931472
    %v323 = vlog2.pop %v294
    %v324 = vmul.f32 %v323, 0.6931472
    %v325 = vlog2.pop %v295
    %v326 = vmul.f32 %v325, 0.6931472
    %v327 = vlog2.pop %v296
    %v328 = vmul.f32 %v327, 0.6931472
    %vm329 = vcmp.lt.f32.partialorder %v25, 0.0
    %vm330 = vcmp.lt.f32.partialorder %v26, 0.0
    %vm331 = vcmp.lt.f32.partialorder %v27, 0.0
    %vm332 = vcmp.lt.f32.partialorder %v28, 0.0
    %vm333 = vcmp.lt.f32.partialorder %v29, 0.0
    %vm334 = vcmp.lt.f32.partialorder %v30, 0.0
    %vm335 = vcmp.lt.f32.partialorder %v31, 0.0
    %vm336 = vcmp.lt.f32.partialorder %v32, 0.0
    %vm337 = vcmp.lt.f32.partialorder %v33, 0.0
    %vm338 = vcmp.lt.f32.partialorder %v34, 0.0
    %vm339 = vcmp.lt.f32.partialorder %v35, 0.0
    %vm340 = vcmp.lt.f32.partialorder %v36, 0.0
    %vm341 = vcmp.lt.f32.partialorder %v37, 0.0
    %vm342 = vcmp.lt.f32.partialorder %v38, 0.0
    %vm343 = vcmp.lt.f32.partialorder %v39, 0.0
    %vm344 = vcmp.lt.f32.partialorder %v40, 0.0
    %v345 = vsub.f32 0.0, %v298
    %v346 = vsub.f32 0.0, %v300
    %v347 = vsub.f32 0.0, %v302
    %v348 = vsub.f32 0.0, %v304
    %v349 = vsub.f32 0.0, %v306
    %v350 = vsub.f32 0.0, %v308
    %v351 = vsub.f32 0.0, %v310
    %v352 = vsub.f32 0.0, %v312
    %v353 = vsub.f32 0.0, %v314
    %v354 = vsub.f32 0.0, %v316
    %v355 = vsub.f32 0.0, %v318
    %v356 = vsub.f32 0.0, %v320
    %v357 = vsub.f32 0.0, %v322
    %v358 = vsub.f32 0.0, %v324
    %v359 = vsub.f32 0.0, %v326
    %v360 = vsub.f32 0.0, %v328
    %v361 = vsel %vm329, %v345, %v298
    %v362 = vsel %vm330, %v346, %v300
    %v363 = vsel %vm331, %v347, %v302
    %v364 = vsel %vm332, %v348, %v304
    %v365 = vsel %vm333, %v349, %v306
    %v366 = vsel %vm334, %v350, %v308
    %v367 = vsel %vm335, %v351, %v310
    %v368 = vsel %vm336, %v352, %v312
    %v369 = vsel %vm337, %v353, %v314
    %v370 = vsel %vm338, %v354, %v316
    %v371 = vsel %vm339, %v355, %v318
    %v372 = vsel %vm340, %v356, %v320
    %v373 = vsel %vm341, %v357, %v322
    %v374 = vsel %vm342, %v358, %v324
    %v375 = vsel %vm343, %v359, %v326
    %v376 = vsel %vm344, %v360, %v328
    %vm377 = vcmask 130048
    %378 = vst.msk [vmem:[#allocation5] sm:$0xff] %vm377, %v361
    %379 = vst.msk [vmem:[#allocation5 + $0x8] sm:$0xff] %vm377, %v362
    %380 = vst.msk [vmem:[#allocation5 + $0x10] sm:$0xff] %vm377, %v363
    %381 = vst.msk [vmem:[#allocation5 + $0x18] sm:$0xff] %vm377, %v364
    %382 = vst.msk [vmem:[#allocation5 + $0x20] sm:$0xff] %vm377, %v365
    %383 = vst.msk [vmem:[#allocation5 + $0x28] sm:$0xff] %vm377, %v366
    %384 = vst.msk [vmem:[#allocation5 + $0x30] sm:$0xff] %vm377, %v367
    %385 = vst.msk [vmem:[#allocation5 + $0x38] sm:$0xff] %vm377, %v368
    %386 = vst.msk [vmem:[#allocation5 + $0x40] sm:$0xff] %vm377, %v369
    %387 = vst.msk [vmem:[#allocation5 + $0x48] sm:$0xff] %vm377, %v370
    %388 = vst.msk [vmem:[#allocation5 + $0x50] sm:$0xff] %vm377, %v371
    %389 = vst.msk [vmem:[#allocation5 + $0x58] sm:$0xff] %vm377, %v372
    %390 = vst.msk [vmem:[#allocation5 + $0x60] sm:$0xff] %vm377, %v373
    %391 = vst.msk [vmem:[#allocation5 + $0x68] sm:$0xff] %vm377, %v374
    %392 = vst.msk [vmem:[#allocation5 + $0x70] sm:$0xff] %vm377, %v375
    %393 = vst.msk [vmem:[#allocation5 + $0x78] sm:$0xff] %vm377, %v376
    // Predicated region
    $region10: #{tpu_custom_call.1} parent=1 // pred_check
      _
    $region11: #{tpu_custom_call.1} parent=1 // pred_check_branch
      %395 = sbr.rel (0) target = $region13
    $region12: #{tpu_custom_call.1} parent=1 // pred_region
      %397 = vsyncadd [#allocation4], 0
      %s398 = sshll.u32 [#allocation5], 4
      %s399 = int_to_ptr.vmem [resolvable:$true] %s398
      %s400 = sshll.u32 %s1, 4
      %s401 = int_to_ptr.hbm [resolvable:$true] %s400
      %406 = dma.vmem_to_hbm [thread:$0]  %s399, 2048, %s401, [#allocation4], 128, 128, 8
    $region13: #{tpu_custom_call.1} parent=1 // pred_fallthru
      _
    // Predicated region
    $region14: #{tpu_custom_call.1} parent=1 // pred_check
      _
    $region15: #{tpu_custom_call.1} parent=1 // pred_check_branch
      %408 = sbr.rel (0) target = $region17
    $region16: #{tpu_custom_call.1} parent=1 // pred_region
      %410 = dma.done [#allocation4], 2048
    $region17: #{tpu_custom_call.1} parent=1 // pred_fallthru
      _
    %411 = vsyncpa [#allocation3], 1
    %412 = vsyncpa [#allocation4], 1

</llo_original>
